<compile_context>
chip_gen: v6e
topology: v6e:2x2x1
jax: 0.10.0
libtpu: 0.0.40
codegen_flags: <defaults>
</compile_context>

<pallas_src>
import jax
import jax.numpy as jnp
from jax.experimental import pallas as pl
from jax.experimental.pallas import tpu as pltpu

# ----------------------------- "configer" constants -----------------------------
N_DATASETS = 2
NUM_UNIFY_CLASSES = 16          # C
NUM_PROTOTYPE = 2               # P
PROJ_DIM = 32                   # D
MEMORY_SIZE = 8                 # memory bank depth per prototype slot
NETWORK_STRIDE = 4
COEFFICIENT = 0.9               # prototype EMA coefficient
LOSS_WEIGHT = 0.1               # contrast loss weight
IGNORE_INDEX = -1
MAX_N_CATS = 8                  # per-dataset label vocabulary size
WITH_AUX = False                # aux heads disabled for this synthetic config

NP_TOTAL = NUM_UNIFY_CLASSES * NUM_PROTOTYPE  # C*P
_EPS = 1e-12
_VMEM_LIMIT = 32 * 1024 * 1024
_TILE_BUDGET = 2 * 1024 * 1024


def _round_up(x, m):
    return (x + m - 1) // m * m


def _pick_tile(n, bytes_per_unit, align, budget_bytes=_TILE_BUDGET):
    """Largest tile t with t | n_pad, (t % align == 0 or t == n_pad) and t*bytes_per_unit <= budget.

    Returns (n_pad, t). n_pad == n unless padding to `align` was unavoidable."""
    cap = max(1, budget_bytes // max(bytes_per_unit, 1))
    for t in range(min(cap, n), 0, -1):
        if n % t == 0 and (t % align == 0 or t == n):
            return n, t
    n_pad = _round_up(n, align)
    hi = max(align, min(cap, n_pad) // align * align)
    for t in range(hi, 0, -align):
        if n_pad % t == 0:
            return n_pad, t
    return n_pad, align


# ================================ Pallas kernels ================================

def _partials_block(loss_sum, valid_cnt):
    """Pack (sum, count) scalars into a lane-dense (8,128) f32 block: [0,0]=sum, [0,1]=count."""
    r = jax.lax.broadcasted_iota(jnp.int32, (8, 128), 0)
    c = jax.lax.broadcasted_iota(jnp.int32, (8, 128), 1)
    blk = jnp.where((r == 0) & (c == 0), loss_sum, jnp.zeros((8, 128), jnp.float32))
    blk = jnp.where((r == 0) & (c == 1), valid_cnt, blk)
    return blk


def seg_ce_kernel(logits_ref, lbl_ref, out_ref):
    """Softmax CE. Block: logits (C, ts, 128), labels (ts, 128) int32 with -1 = ignore/pad."""
    x = logits_ref[...].astype(jnp.float32)           # (C, ts, 128), 128 = lane axis
    lbl = lbl_ref[...]                                 # (ts, 128) int32
    valid = lbl >= 0
    cls = jnp.maximum(lbl, 0)

    xmax = jnp.max(x, axis=0)                          # (ts, 128)  elementwise over C slabs
    e = jnp.exp(x - xmax[None, :, :])                  # (C, ts, 128)
    denom = jnp.sum(e, axis=0)                         # (ts, 128)
    ci = jax.lax.broadcasted_iota(jnp.int32, x.shape, 0)
    pos = jnp.sum(jnp.where(ci == cls[None, :, :], e, 0.0), axis=0)

    li = jnp.where(valid, jnp.log(denom) - jnp.log(jnp.maximum(pos, _EPS)), 0.0)
    out_ref[...] = _partials_block(jnp.sum(li), jnp.sum(valid.astype(jnp.float32)))


def contrast_fused_kernel(emb_ref, proto_ref, lbl_ref, out_ref):
    """Fused: s = protos @ emb (MXU), build multi-positive target in-kernel, softmax CE.

    Block: emb (D, ts) f32 native layout, protos (C*P, D) f32 resident, labels (1, ts) int32."""
    e = emb_ref[...].astype(jnp.bfloat16)
    p = proto_ref[...].astype(jnp.bfloat16)
    s = jax.lax.dot_general(p, e,
                            dimension_numbers=(((1,), (0,)), ((), ())),
                            preferred_element_type=jnp.float32)   # (C*P, ts) f32

    lbl = lbl_ref[...]                                 # (1, ts) int32, -1 = ignore / padding
    valid = lbl >= 0
    base = jnp.maximum(lbl, 0) * NUM_PROTOTYPE         # first prototype slot of the true class

    row = jax.lax.broadcasted_iota(jnp.int32, s.shape, 0)          # (C*P, ts)
    in_class = (row >= base) & (row < base + NUM_PROTOTYPE)

    # argmax prototype slot within the true class (first max on ties, matching torch argmax)
    neg = jnp.float32(-1e30)
    class_vals = jnp.where(in_class, s, neg)
    class_max = jnp.max(class_vals, axis=0, keepdims=True)          # (1, ts)
    best_row = jnp.min(jnp.where(in_class & (class_vals >= class_max), row, NP_TOTAL),
                       axis=0, keepdims=True)                       # (1, ts)
    # positives = {class*P + 0} ∪ {class*P + argmax_p}  (contrast_mask_label + proto one-hot)
    pos_mask = (row == base) | (row == best_row)

    col_max = jnp.max(s, axis=0, keepdims=True)
    ex = jnp.exp(s - col_max)
    denom = jnp.sum(ex, axis=0, keepdims=True)
    pos = jnp.sum(jnp.where(pos_mask, ex, 0.0), axis=0, keepdims=True)

    li = jnp.where(valid, jnp.log(denom) - jnp.log(jnp.maximum(pos, _EPS)), 0.0)
    out_ref[...] = _partials_block(jnp.sum(li), jnp.sum(valid.astype(jnp.float32)))


# ================================ kernel wrappers ================================

def seg_multi_pos_ce(logits, lbl):
    """Mean softmax CE over valid pixels; logits NCHW, lbl (B,H,W) int32 with -1 = ignore."""
    B, C, H, W = logits.shape
    S = H * W
    nS = _round_up(S, 128) // 128
    logits_f = logits.reshape(B, C, S)                 # free reshape (contiguous trailing dims)
    lbl_f = lbl.reshape(B, S)

    # per 128-lane spatial unit: logits block + exp intermediate + labels/partials headroom
    per_unit = (2 * C + 3) * 128 * 4
    nS_pad, ts = _pick_tile(nS, per_unit, 8)
    S_pad = nS_pad * 128
    if S_pad != S:
        logits_f = jnp.pad(logits_f, ((0, 0), (0, 0), (0, S_pad - S)))
        lbl_f = jnp.pad(lbl_f, ((0, 0), (0, S_pad - S)), constant_values=IGNORE_INDEX)
    logits_v = logits_f.reshape(B, C, nS_pad, 128)
    lbl_v = lbl_f.reshape(B, nS_pad, 128)
    nT = nS_pad // ts

    partials = pl.pallas_call(
        seg_ce_kernel,
        out_shape=jax.ShapeDtypeStruct((B, nT * 8, 128), jnp.float32),
        grid=(B, nT),
        in_specs=[pl.BlockSpec((None, C, ts, 128), lambda b, i: (b, 0, i, 0)),
                  pl.BlockSpec((None, ts, 128), lambda b, i: (b, i, 0))],
        out_specs=pl.BlockSpec((None, 8, 128), lambda b, i: (b, i, 0)),
        compiler_params=pltpu.CompilerParams(
            dimension_semantics=("parallel", "parallel"),
            vmem_limit_bytes=_VMEM_LIMIT),
    )(logits_v, lbl_v)
    total = jnp.sum(partials[..., 0])
    count = jnp.sum(partials[..., 1])
    return total / jnp.maximum(count, 1.0)


def fused_contrast_loss(embedding, prototypes, lbl_c):
    """Fused proto-logits matmul + multi-positive CE.

    embedding: (B, D, Hs, Ws) f32 native layout; prototypes: (C*P, D) f32; lbl_c: (B, Hs, Ws)."""
    B, D, Hs, Ws = embedding.shape
    CP = prototypes.shape[0]
    S2 = Hs * Ws
    emb_f = embedding.reshape(B, D, S2)                # free reshape, no transpose / cast pass
    lbl_f = lbl_c.reshape(B, 1, S2)

    # per pixel column: emb column + label + ~6 CP-sized f32 intermediates (s, masks, exp, ...)
    per_unit = (D + 1 + 6 * CP) * 4
    S2_pad, ts = _pick_tile(S2, per_unit, 128)
    if S2_pad != S2:
        emb_f = jnp.pad(emb_f, ((0, 0), (0, 0), (0, S2_pad - S2)))
        lbl_f = jnp.pad(lbl_f, ((0, 0), (0, 0), (0, S2_pad - S2)),
                        constant_values=IGNORE_INDEX)
    nT = S2_pad // ts

    partials = pl.pallas_call(
        contrast_fused_kernel,
        out_shape=jax.ShapeDtypeStruct((B, nT * 8, 128), jnp.float32),
        grid=(B, nT),
        in_specs=[pl.BlockSpec((None, D, ts), lambda b, i: (b, 0, i)),
                  pl.BlockSpec((CP, D), lambda b, i: (0, 0)),      # prototypes stay resident
                  pl.BlockSpec((None, 1, ts), lambda b, i: (b, 0, i))],
        out_specs=pl.BlockSpec((None, 8, 128), lambda b, i: (b, i, 0)),
        compiler_params=pltpu.CompilerParams(
            dimension_semantics=("parallel", "parallel"),
            vmem_limit_bytes=_VMEM_LIMIT),
    )(emb_f, prototypes, lbl_f)
    total = jnp.sum(partials[..., 0])
    count = jnp.sum(partials[..., 1])
    return total / jnp.maximum(count, 1.0)


# ================================ plain-JAX glue =================================

def _build_remap_table():
    """Deterministic stand-in for classRemapper: dataset label -> unified class."""
    d = jnp.arange(N_DATASETS)[:, None]
    l = jnp.arange(MAX_N_CATS)[None, :]
    return ((l * 5 + d * 3) % NUM_UNIFY_CLASSES).astype(jnp.int32)


def _remap_unified(lb, dataset_ids, remap_table):
    valid = lb != IGNORE_INDEX
    lb_c = jnp.clip(lb, 0, MAX_N_CATS - 1)
    ds = dataset_ids[:, None, None]
    unified = remap_table[ds, lb_c]              # (B, H, W)
    return unified, valid


def cross_datasets_ce_loss_kmeans_forward(preds, target, dataset_ids, is_warmup=False):
    logits = preds["seg"]                        # (B, C, H, W)
    embedding = preds["embed"]                   # (B, D, H/s, W/s)
    memory_bank, memory_bank_ptr, memory_bank_init, prototypes = preds["prototypes"]

    remap_table = _build_remap_table()

    # ---- prototype EMA update (plain JAX: ~32 KiB, a kernel launch would dominate) ----
    # TODO(synk): memory_bank_push + AdaptiveKMeansProtoLearning (constrained k-means on hard
    #             examples) are external classes; skipped — the memory bank is consumed as-is.
    mean = jnp.mean(memory_bank, axis=1)
    mean = mean / jnp.maximum(jnp.linalg.norm(mean, axis=-1, keepdims=True), _EPS)
    blended = mean * (1.0 - COEFFICIENT) + prototypes * COEFFICIENT
    new_prototypes = blended / jnp.maximum(
        jnp.linalg.norm(blended, axis=-1, keepdims=True), _EPS)

    # ---- unified labels (stand-in classRemapper), ignore encoded as -1 ----
    unified, valid = _remap_unified(target, dataset_ids, remap_table)
    lbl_full = jnp.where(valid, unified, IGNORE_INDEX).astype(jnp.int32)   # (B,H,W)

    # ---- seg loss: logits streamed in native NCHW (spatial flattened to 128 lanes) ----
    loss_seg = seg_multi_pos_ce(logits, lbl_full)

    loss_aux = None
    loss_domain = None
    kl_loss = None

    if is_warmup:
        return loss_seg, loss_seg, loss_aux, None, loss_domain, kl_loss, new_prototypes

    # ---- contrast loss: fused protos @ emb + multi-positive CE (targets built in-kernel) ----
    lbl_c = lbl_full[:, ::NETWORK_STRIDE, ::NETWORK_STRIDE]
    loss_contrast = fused_contrast_loss(embedding, new_prototypes, lbl_c)

    loss = loss_seg + LOSS_WEIGHT * loss_contrast
    return loss, loss_seg, loss_aux, loss_contrast, loss_domain, kl_loss, new_prototypes


# ==================================== driver =====================================

if __name__ == "__main__":
    key = jax.random.PRNGKey(0)
    kb, ke, kl, ki, km, kp = jax.random.split(key, 6)

    B, H, W = 2, 16, 16
    Hs, Ws = H // NETWORK_STRIDE, W // NETWORK_STRIDE

    logits = jax.random.normal(kb, (B, NUM_UNIFY_CLASSES, H, W), jnp.float32)
    embedding = jax.random.normal(ke, (B, PROJ_DIM, Hs, Ws), jnp.float32)
    embedding = embedding / jnp.linalg.norm(embedding, axis=1, keepdims=True)

    lb = jax.random.randint(kl, (B, H, W), 0, MAX_N_CATS, dtype=jnp.int32)
    ignore_mask = jax.random.bernoulli(ki, 0.1, (B, H, W))
    lb = jnp.where(ignore_mask, IGNORE_INDEX, lb)

    dataset_ids = jnp.array([0, 1], dtype=jnp.int32)

    memory_bank = jax.random.normal(km, (NP_TOTAL, MEMORY_SIZE, PROJ_DIM), jnp.float32)
    memory_bank_ptr = jnp.zeros((NP_TOTAL,), jnp.int32)
    memory_bank_init = jnp.ones((NP_TOTAL,), jnp.bool_)
    prototypes = jax.random.normal(kp, (NP_TOTAL, PROJ_DIM), jnp.float32)
    prototypes = prototypes / jnp.linalg.norm(prototypes, axis=-1, keepdims=True)

    preds = {
        "seg": logits,
        "embed": embedding,
        "prototypes": (memory_bank, memory_bank_ptr, memory_bank_init, prototypes),
    }

    out = cross_datasets_ce_loss_kmeans_forward(preds, lb, dataset_ids, is_warmup=False)
    loss, loss_seg, loss_aux, loss_contrast, loss_domain, kl_loss, new_protos = out
    jax.block_until_ready(loss)
    jax.block_until_ready(new_protos)

    assert jnp.isfinite(loss), "loss is not finite"
    assert jnp.isfinite(loss_seg), "seg loss is not finite"
    assert jnp.isfinite(loss_contrast), "contrast loss is not finite"
    print("KERNEL_OK")
</pallas_src>

<mosaic_0001>
module attributes {stable_mosaic.version = 11 : i64} {
  func.func @seg_ce_kernel(%arg0: i32, %arg1: i32, %arg2: memref<1x16x2x128xf32, #tpu.memory_space<vmem>>, %arg3: memref<1x2x128xi32, #tpu.memory_space<vmem>>, %arg4: memref<1x8x128xf32, #tpu.memory_space<vmem>>) attributes {dimension_semantics = [#tpu.dimension_semantics<parallel>, #tpu.dimension_semantics<parallel>], iteration_bounds = array<i64: 2, 1>, scalar_prefetch = 0 : i64, scratch_operands = 0 : i64, tpu.core_type = #tpu.core_type<tc>, window_params = [{transform_indices = @transform_0, window_bounds = array<i64: 1, 16, 2, 128>}, {transform_indices = @transform_1, window_bounds = array<i64: 1, 2, 128>}, {transform_indices = @transform_2, window_bounds = array<i64: 1, 8, 128>}]} {
    %c0 = arith.constant 0 : index
    %c0_0 = arith.constant 0 : index
    %c0_1 = arith.constant 0 : index
    %c0_2 = arith.constant 0 : index
    %0 = vector.load %arg2[%c0, %c0_0, %c0_1, %c0_2] : memref<1x16x2x128xf32, #tpu.memory_space<vmem>>, vector<1x16x2x128xf32>
    %1 = vector.shape_cast %0 : vector<1x16x2x128xf32> to vector<16x2x128xf32>
    %c0_3 = arith.constant 0 : index
    %c0_4 = arith.constant 0 : index
    %c0_5 = arith.constant 0 : index
    %2 = vector.load %arg3[%c0_3, %c0_4, %c0_5] : memref<1x2x128xi32, #tpu.memory_space<vmem>>, vector<1x2x128xi32>
    %3 = vector.shape_cast %2 : vector<1x2x128xi32> to vector<2x128xi32>
    %c0_i32 = arith.constant 0 : i32
    %4 = vector.broadcast %c0_i32 : i32 to vector<2x128xi32>
    %5 = arith.cmpi sge, %3, %4 : vector<2x128xi32>
    %c0_i32_6 = arith.constant 0 : i32
    %6 = vector.broadcast %c0_i32_6 : i32 to vector<2x128xi32>
    %7 = arith.maxsi %3, %6 : vector<2x128xi32>
    %cst = arith.constant dense<0xFF800000> : vector<2x128xf32>
    %8 = vector.multi_reduction <maximumf>, %1, %cst [0] : vector<16x2x128xf32> to vector<2x128xf32>
    %9 = vector.shape_cast %8 : vector<2x128xf32> to vector<1x2x128xf32>
    %10 = vector.broadcast %9 : vector<1x2x128xf32> to vector<16x2x128xf32>
    %11 = arith.subf %1, %10 : vector<16x2x128xf32>
    %12 = math.exp %11 : vector<16x2x128xf32>
    %cst_7 = arith.constant dense<0.000000e+00> : vector<2x128xf32>
    %13 = vector.multi_reduction <add>, %12, %cst_7 [0] : vector<16x2x128xf32> to vector<2x128xf32>
    %14 = tpu.iota {dimensions = array<i32: 0>} : vector<16x2x128xi32>
    %15 = vector.shape_cast %7 : vector<2x128xi32> to vector<1x2x128xi32>
    %16 = vector.broadcast %15 : vector<1x2x128xi32> to vector<16x2x128xi32>
    %17 = arith.cmpi eq, %14, %16 : vector<16x2x128xi32>
    %cst_8 = arith.constant 0.000000e+00 : f32
    %18 = vector.broadcast %cst_8 : f32 to vector<16x2x128xf32>
    %19 = arith.select %17, %12, %18 : vector<16x2x128xi1>, vector<16x2x128xf32>
    %cst_9 = arith.constant dense<0.000000e+00> : vector<2x128xf32>
    %20 = vector.multi_reduction <add>, %19, %cst_9 [0] : vector<16x2x128xf32> to vector<2x128xf32>
    %21 = math.log %13 : vector<2x128xf32>
    %cst_10 = arith.constant 9.99999996E-13 : f32
    %22 = vector.broadcast %cst_10 : f32 to vector<2x128xf32>
    %23 = arith.maximumf %20, %22 : vector<2x128xf32>
    %24 = math.log %23 : vector<2x128xf32>
    %25 = arith.subf %21, %24 : vector<2x128xf32>
    %cst_11 = arith.constant 0.000000e+00 : f32
    %26 = vector.broadcast %cst_11 : f32 to vector<2x128xf32>
    %27 = arith.select %5, %25, %26 : vector<2x128xi1>, vector<2x128xf32>
    %28 = vector.shape_cast %27 : vector<2x128xf32> to vector<1x2x128xf32>
    %cst_12 = arith.constant dense<0.000000e+00> : vector<1xf32>
    %29 = vector.multi_reduction <add>, %28, %cst_12 [1, 2] : vector<1x2x128xf32> to vector<1xf32>
    %30 = vector.shape_cast %29 : vector<1xf32> to vector<1x1x1xf32>
    %31 = vector.extract %30[0, 0, 0] : f32 from vector<1x1x1xf32>
    %32 = arith.extui %5 : vector<2x128xi1> to vector<2x128xi32>
    %33 = arith.sitofp %32 : vector<2x128xi32> to vector<2x128xf32>
    %34 = vector.shape_cast %33 : vector<2x128xf32> to vector<1x2x128xf32>
    %cst_13 = arith.constant dense<0.000000e+00> : vector<1xf32>
    %35 = vector.multi_reduction <add>, %34, %cst_13 [1, 2] : vector<1x2x128xf32> to vector<1xf32>
    %36 = vector.shape_cast %35 : vector<1xf32> to vector<1x1x1xf32>
    %37 = vector.extract %36[0, 0, 0] : f32 from vector<1x1x1xf32>
    %38 = tpu.iota {dimensions = array<i32: 0>} : vector<8x128xi32>
    %39 = tpu.iota {dimensions = array<i32: 1>} : vector<8x128xi32>
    %c0_i32_14 = arith.constant 0 : i32
    %40 = vector.broadcast %c0_i32_14 : i32 to vector<8x128xi32>
    %41 = arith.cmpi eq, %38, %40 : vector<8x128xi32>
    %c0_i32_15 = arith.constant 0 : i32
    %42 = vector.broadcast %c0_i32_15 : i32 to vector<8x128xi32>
    %43 = arith.cmpi eq, %39, %42 : vector<8x128xi32>
    %44 = arith.andi %41, %43 : vector<8x128xi1>
    %cst_16 = arith.constant 0.000000e+00 : f32
    %45 = vector.broadcast %cst_16 : f32 to vector<8x128xf32>
    %46 = vector.broadcast %31 : f32 to vector<8x128xf32>
    %47 = arith.select %44, %46, %45 : vector<8x128xi1>, vector<8x128xf32>
    %c0_i32_17 = arith.constant 0 : i32
    %48 = vector.broadcast %c0_i32_17 : i32 to vector<8x128xi32>
    %49 = arith.cmpi eq, %38, %48 : vector<8x128xi32>
    %c1_i32 = arith.constant 1 : i32
    %50 = vector.broadcast %c1_i32 : i32 to vector<8x128xi32>
    %51 = arith.cmpi eq, %39, %50 : vector<8x128xi32>
    %52 = arith.andi %49, %51 : vector<8x128xi1>
    %53 = vector.broadcast %37 : f32 to vector<8x128xf32>
    %54 = arith.select %52, %53, %47 : vector<8x128xi1>, vector<8x128xf32>
    %c0_18 = arith.constant 0 : index
    %c0_19 = arith.constant 0 : index
    %c0_20 = arith.constant 0 : index
    %55 = vector.load %arg4[%c0_18, %c0_19, %c0_20] : memref<1x8x128xf32, #tpu.memory_space<vmem>>, vector<1x8x128xf32>
    %56 = vector.shape_cast %55 : vector<1x8x128xf32> to vector<8x128xf32>
    %57 = vector.shape_cast %54 : vector<8x128xf32> to vector<1x8x128xf32>
    tpu.vector_store %arg4[%c0_18, %c0_19, %c0_20], %57 {strides = array<i32>} : memref<1x8x128xf32, #tpu.memory_space<vmem>>, vector<1x8x128xf32>,
    return
  }
  func.func @transform_0(%arg0: i32, %arg1: i32) -> (i32, i32, i32, i32) {
    %c0_i32 = arith.constant 0 : i32
    %c0_i32_0 = arith.constant 0 : i32
    %c0_i32_1 = arith.constant 0 : i32
    return %arg0, %c0_i32, %arg1, %c0_i32_0 : i32, i32, i32, i32
  }
  func.func @transform_1(%arg0: i32, %arg1: i32) -> (i32, i32, i32) {
    %c0_i32 = arith.constant 0 : i32
    %c0_i32_0 = arith.constant 0 : i32
    return %arg0, %arg1, %c0_i32 : i32, i32, i32
  }
  func.func @transform_2(%arg0: i32, %arg1: i32) -> (i32, i32, i32) {
    %c0_i32 = arith.constant 0 : i32
    %c0_i32_0 = arith.constant 0 : i32
    return %arg0, %arg1, %c0_i32 : i32, i32, i32
  }
}

</mosaic_0001>

<llo_original>
// kernel: tpu_custom_call.1
$region0: #{tpu_custom_call.1}
  #allocation0 [shape = 'u32[]', space=smem, size = 0x4, offset = 0x4, fixed_abs, tag = 'smem constant byte address 0x4 - core index']
  #allocation1 [shape = 'u32[144,128]{1,0:T(1,128)}', space=vmem, size = 0x12000, scoped, tag = 'internal scratch']
  %s0 = inlined_call_operand.hbm [shape: f32[2,16,2,128], index: 0, kind: input, shape index: {}]
  %s1 = inlined_call_operand.hbm [shape: s32[2,2,128], index: 1, kind: input, shape index: {}]
  %s2 = inlined_call_operand.hbm [shape: f32[2,8,128], index: 2, kind: output, shape index: {}]
  %s3 = sld [smem:[#allocation0]]
  $region49: #{tpu_custom_call.1} parent=0
    _
  %s5 = ssub.s32 1, %s3
  %s6 = scalar_select 0, %s5, %s3
  $region1: #{tpu_custom_call.1} parent=0
    #allocation2 [shape = 'u8[32768]{0}', space=vmem, size = 0x8000, scoped, tag = 'input window, operand 0']
    #allocation3 [shape = 's32[2]{0}', space=sflag, size = 0x8, scoped, tag = 'scoped memory for tpu_custom_call.1']
    #allocation4 [shape = 's32[2]{0}', space=sflag, size = 0x8, scoped, tag = 'scoped memory for tpu_custom_call.1']
    #allocation5 [shape = 'u8[2048]{0}', space=vmem, size = 0x800, scoped, tag = 'input window, operand 1']
    #allocation6 [shape = 's32[2]{0}', space=sflag, size = 0x8, scoped, tag = 'scoped memory for tpu_custom_call.1']
    #allocation7 [shape = 'u8[8192]{0}', space=vmem, size = 0x2000, scoped, tag = 'output window, operand 0']
    %7 = vsyncpa [#allocation3], 0
    %s8 = scalar_lea.sflag [#allocation3], 1
    %9 = vsyncpa %s8, 0
    %10 = vsyncpa [#allocation6], 0
    %s11 = scalar_lea.sflag [#allocation6], 1
    %12 = vsyncpa %s11, 0
    %13 = vsyncpa [#allocation4], 0
    %s14 = scalar_lea.sflag [#allocation4], 1
    %15 = vsyncpa %s14, 0
    loop: start=0, step=1, limit=4
    $region2: #{tpu_custom_call.1} parent=1 // loop_pre_header
      _
    $region3: #{tpu_custom_call.1} parent=1 // loop_header
      %s17 = sphi 0, %s21
      %p18 = scmp.ge.s32.totalorder %s17, 4
      %s24 = sphi 0, %s36
      %s25 = sphi 0, %s32
      %s26 = sphi 0, %s24
      %s27 = sphi 0, %s25
      %s28 = sphi 0, %s26
      %s29 = sphi 0, %s27
      %s41 = sphi 0, %s43
      %s44 = sphi 0, %s41
      %s45 = sphi 0, %s44
      %s61 = sphi 0, %s45
      %s69 = sphi 0, %s71
      %s72 = sphi 0, %s69
      %s73 = sphi 0, %s72
      %s89 = sphi 0, %s73
      %s97 = sphi 0, %s99
      %s100 = sphi 0, %s97
      %s101 = sphi 0, %s100
      %s117 = sphi 0, %s101
    $region4: #{tpu_custom_call.1} parent=1 // loop_header_branch
      %20 = sbr.rel (%p18) target = $region8
    $region5: #{tpu_custom_call.1} parent=1 // loop_body
      %s22 = ssub.s32 %s17, 1
      %s23 = ssub.s32 %s17, 2
      %s30 = sadd.s32 1, %s25
      %p31 = scmp.ge.s32.totalorder %s30, 1
      %s32 = scalar_select %p31, 0, %s30
      %s33 = sadd.s32 1, %s24
      %s34 = scalar_select %p31, %s33, %s24
      %p35 = scmp.ge.s32.totalorder %s34, 2
      %s36 = scalar_select %p35, 0, %s34
      %s37 = ssub.s32 %s24, %s36
      %s38 = ssub.s32 %s25, %s32
      %s39 = sor.u32 %s37, %s38
      %p40 = scmp.eq.s32.totalorder %s39, 0
      %s42 = sadd.s32 %s41, 1
      %s43 = scalar_select %p40, %s41, %s42
      %p46 = pneg %p40
      %p47 = scmp.eq.s32.totalorder %s17, 1
      %p48 = por %p46, %p47
      %p49 = scmp.ne.s32.totalorder %s41, %s44
      %p50 = scmp.eq.s32.totalorder %s17, 0
      %p51 = por %p49, %p50
      %p52 = scmp.ne.s32.totalorder %s41, %s44
      %p53 = scmp.eq.s32.totalorder %s22, 1
      %p54 = por %p52, %p53
      %p55 = scmp.ne.s32.totalorder %s44, %s45
      %p56 = scmp.eq.s32.totalorder %s22, 0
      %p57 = por %p55, %p56
      %p58 = scmp.ne.s32.totalorder %s44, %s45
      %p59 = scmp.eq.s32.totalorder %s23, 1
      %p60 = por %p58, %p59
      %p62 = scmp.ne.s32.totalorder %s45, %s61
      %p63 = scmp.eq.s32.totalorder %s23, 0
      %p64 = por %p62, %p63
      %s65 = ssub.s32 %s24, %s36
      %s66 = ssub.s32 %s25, %s32
      %s67 = sor.u32 %s65, %s66
      %p68 = scmp.eq.s32.totalorder %s67, 0
      %s70 = sadd.s32 %s69, 1
      %s71 = scalar_select %p68, %s69, %s70
      %p74 = pneg %p68
      %p75 = scmp.eq.s32.totalorder %s17, 1
      %p76 = por %p74, %p75
      %p77 = scmp.ne.s32.totalorder %s69, %s72
      %p78 = scmp.eq.s32.totalorder %s17, 0
      %p79 = por %p77, %p78
      %p80 = scmp.ne.s32.totalorder %s69, %s72
      %p81 = scmp.eq.s32.totalorder %s22, 1
      %p82 = por %p80, %p81
      %p83 = scmp.ne.s32.totalorder %s72, %s73
      %p84 = scmp.eq.s32.totalorder %s22, 0
      %p85 = por %p83, %p84
      %p86 = scmp.ne.s32.totalorder %s72, %s73
      %p87 = scmp.eq.s32.totalorder %s23, 1
      %p88 = por %p86, %p87
      %p90 = scmp.ne.s32.totalorder %s73, %s89
      %p91 = scmp.eq.s32.totalorder %s23, 0
      %p92 = por %p90, %p91
      %s93 = ssub.s32 %s24, %s36
      %s94 = ssub.s32 %s25, %s32
      %s95 = sor.u32 %s93, %s94
      %p96 = scmp.eq.s32.totalorder %s95, 0
      %s98 = sadd.s32 %s97, 1
      %s99 = scalar_select %p96, %s97, %s98
      %p102 = pneg %p96
      %p103 = scmp.eq.s32.totalorder %s17, 1
      %p104 = por %p102, %p103
      %p105 = scmp.ne.s32.totalorder %s97, %s100
      %p106 = scmp.eq.s32.totalorder %s17, 0
      %p107 = por %p105, %p106
      %p108 = scmp.ne.s32.totalorder %s97, %s100
      %p109 = scmp.eq.s32.totalorder %s22, 1
      %p110 = por %p108, %p109
      %p111 = scmp.ne.s32.totalorder %s100, %s101
      %p112 = scmp.eq.s32.totalorder %s22, 0
      %p113 = por %p111, %p112
      %p114 = scmp.ne.s32.totalorder %s100, %s101
      %p115 = scmp.eq.s32.totalorder %s23, 1
      %p116 = por %p114, %p115
      %p118 = scmp.ne.s32.totalorder %s101, %s117
      %p119 = scmp.eq.s32.totalorder %s23, 0
      %p120 = por %p118, %p119
      %p121 = scmp.le.s32.totalorder 1, %s17
      %p122 = scmp.lt.s32.totalorder %s17, 3
      %p123 = pnand %p121, %p122
      %p124 = pneg %p123
      // Predicated region
      $region9: #{tpu_custom_call.1} parent=5 // pred_check
        _
      $region10: #{tpu_custom_call.1} parent=5 // pred_check_branch
        %126 = sbr.rel (%p123) target = $region12
      $region11: #{tpu_custom_call.1} parent=5 // pred_region
        %s127 = ssub.s32 %s17, 1
      $region12: #{tpu_custom_call.1} parent=5 // pred_fallthru
        _
      %p128 = scmp.lt.s32.totalorder %s17, 2
      // Predicated region
      $region13: #{tpu_custom_call.1} parent=5 // pred_check
        %p129 = pneg %p128
      $region14: #{tpu_custom_call.1} parent=5 // pred_check_branch
        %131 = sbr.rel (%p129) target = $region16
      $region15: #{tpu_custom_call.1} parent=5 // pred_region
        // Predicated region
        $region17: #{tpu_custom_call.1} parent=15 // pred_check
          %p132 = pneg %p51
        $region18: #{tpu_custom_call.1} parent=15 // pred_check_branch
          %134 = sbr.rel (%p132) target = $region20
        $region19: #{tpu_custom_call.1} parent=15 // pred_region
          %s135 = sand.u32 %s41, 1
          %s136 = scalar_lea.sflag [#allocation3], %s135
          %s137 = sand.u32 %s41, 1
          %s138 = smul.addr %s137, 32
          %s139 = scalar_lea.vmem [#allocation2], %s138
          %s141 = ssub.s32 512, 512
          %142 = vsyncadd %s136, %s141
          %s143 = smul.addr %s24, 16
          %s144 = sadd.s32 %s25, %s143
          %s145 = smul.addr %s144, 32
          %s146 = scalar_lea.hbm %s0, %s145
          %s147 = sshll.u32 %s139, 4
          %s148 = int_to_ptr.vmem [resolvable:$true] %s147
          %153 = dma.hbm_to_vmem [thread:$0]  %s146, 512, %s148, %s136, 32, 32, 2
        $region20: #{tpu_custom_call.1} parent=15 // pred_fallthru
          _
        // Predicated region
        $region21: #{tpu_custom_call.1} parent=15 // pred_check
          %p154 = pneg %p79
        $region22: #{tpu_custom_call.1} parent=15 // pred_check_branch
          %156 = sbr.rel (%p154) target = $region24
        $region23: #{tpu_custom_call.1} parent=15 // pred_region
          %s157 = sand.u32 %s69, 1
          %s158 = scalar_lea.sflag [#allocation6], %s157
          %s159 = sand.u32 %s69, 1
          %s160 = smul.addr %s159, 2
          %s161 = scalar_lea.vmem [#allocation5], %s160
          %s163 = ssub.s32 32, 32
          %164 = vsyncadd %s158, %s163
          %s165 = sadd.s32 %s25, %s24
          %s166 = smul.addr %s165, 32
          %s167 = scalar_lea.hbm %s1, %s166
          %s169 = sshll.u32 %s161, 4
          %s170 = int_to_ptr.vmem [resolvable:$true] %s169
          %172 = dma.hbm_to_vmem [thread:$0]  %s167, 32, %s170, %s158
        $region24: #{tpu_custom_call.1} parent=15 // pred_fallthru
          _
      $region16: #{tpu_custom_call.1} parent=5 // pred_fallthru
        _
      %p173 = scmp.le.s32.totalorder 1, %s17
      %p174 = scmp.lt.s32.totalorder %s17, 3
      %p175 = pnand %p173, %p174
      %p176 = pneg %p175
      // Predicated region
      $region25: #{tpu_custom_call.1} parent=5 // pred_check
        _
      $region26: #{tpu_custom_call.1} parent=5 // pred_check_branch
        %178 = sbr.rel (%p175) target = $region28
      $region27: #{tpu_custom_call.1} parent=5 // pred_region
        %s179 = ssub.s32 %s17, 1
        %s180 = sand.u32 %s44, 1
        %s181 = scalar_lea.sflag [#allocation3], %s180
        %s182 = sand.u32 %s44, 1
        %s183 = smul.addr %s182, 32
        %s184 = scalar_lea.vmem [#allocation2], %s183
        // Predicated region
        $region29: #{tpu_custom_call.1} parent=27 // pred_check
          %p185 = pneg %p57
        $region30: #{tpu_custom_call.1} parent=27 // pred_check_branch
          %187 = sbr.rel (%p185) target = $region32
        $region31: #{tpu_custom_call.1} parent=27 // pred_region
          %188 = dma.done %s181, 512
        $region32: #{tpu_custom_call.1} parent=27 // pred_fallthru
          _
        %s189 = sand.u32 %s72, 1
        %s190 = scalar_lea.sflag [#allocation6], %s189
        %s191 = sand.u32 %s72, 1
        %s192 = smul.addr %s191, 2
        %s193 = scalar_lea.vmem [#allocation5], %s192
        // Predicated region
        $region33: #{tpu_custom_call.1} parent=27 // pred_check
          %p194 = pneg %p85
        $region34: #{tpu_custom_call.1} parent=27 // pred_check_branch
          %196 = sbr.rel (%p194) target = $region36
        $region35: #{tpu_custom_call.1} parent=27 // pred_region
          %197 = dma.done %s190, 32
        $region36: #{tpu_custom_call.1} parent=27 // pred_fallthru
          _
        %s198 = sand.u32 %s44, 1
        %s199 = scalar_lea.sflag [#allocation3], %s198
        %s200 = sand.u32 %s44, 1
        %s201 = smul.addr %s200, 32
        %s202 = scalar_lea.vmem [#allocation2], %s201
        %p203 = pneg %p57
        %p204 = pneg %p54
        %s205 = sand.u32 %s72, 1
        %s206 = scalar_lea.sflag [#allocation6], %s205
        %s207 = sand.u32 %s72, 1
        %s208 = smul.addr %s207, 2
        %s209 = scalar_lea.vmem [#allocation5], %s208
        %p210 = pneg %p85
        %p211 = pneg %p82
        %p212 = pneg %p113
        %p213 = pneg %p110
        %s214 = sand.u32 %s100, 1
        %s215 = scalar_lea.sflag [#allocation4], %s214
        %s216 = sand.u32 %s100, 1
        %s217 = smul.addr %s216, 8
        %s218 = scalar_lea.vmem [#allocation7], %s217
        %v219 = vld [vmem:[%s184] sm:$0x3]
        %v220 = vld [vmem:[%s184 + $0x2] sm:$0x3]
        %v221 = vld [vmem:[%s184 + $0x4] sm:$0x3]
        %v222 = vld [vmem:[%s184 + $0x6] sm:$0x3]
        %v223 = vld [vmem:[%s184 + $0x8] sm:$0x3]
        %v224 = vld [vmem:[%s184 + $0xa] sm:$0x3]
        %v225 = vld [vmem:[%s184 + $0xc] sm:$0x3]
        %v226 = vld [vmem:[%s184 + $0xe] sm:$0x3]
        %v227 = vld [vmem:[%s184 + $0x10] sm:$0x3]
        %v228 = vld [vmem:[%s184 + $0x12] sm:$0x3]
        %v229 = vld [vmem:[%s184 + $0x14] sm:$0x3]
        %v230 = vld [vmem:[%s184 + $0x16] sm:$0x3]
        %v231 = vld [vmem:[%s184 + $0x18] sm:$0x3]
        %v232 = vld [vmem:[%s184 + $0x1a] sm:$0x3]
        %v233 = vld [vmem:[%s184 + $0x1c] sm:$0x3]
        %v234 = vld [vmem:[%s184 + $0x1e] sm:$0x3]
        %v235 = vld [vmem:[%s193] sm:$0x3]
        %vm236 = vcmp.ge.s32.totalorder %v235, 0
        %vm237 = vcmp.gt.s32.totalorder %v235, 0
        %v238 = vsel %vm237, %v235, 0
        %vm239 = vcmask 1041408
        %v240 = vsel %vm239, %v219, -inf
        %v241 = vsel %vm239, %v220, -inf
        %v242 = vsel %vm239, %v221, -inf
        %v243 = vsel %vm239, %v222, -inf
        %v244 = vsel %vm239, %v223, -inf
        %v245 = vmax.f32 %v240, %v244
        %v246 = vsel %vm239, %v224, -inf
        %v247 = vmax.f32 %v241, %v246
        %v248 = vsel %vm239, %v225, -inf
        %v249 = vmax.f32 %v242, %v248
        %v250 = vsel %vm239, %v226, -inf
        %v251 = vmax.f32 %v243, %v250
        %v252 = vsel %vm239, %v227, -inf
        %v253 = vmax.f32 %v245, %v252
        %v254 = vsel %vm239, %v228, -inf
        %v255 = vmax.f32 %v247, %v254
        %v256 = vsel %vm239, %v229, -inf
        %v257 = vmax.f32 %v249, %v256
        %v258 = vsel %vm239, %v230, -inf
        %v259 = vmax.f32 %v251, %v258
        %v260 = vsel %vm239, %v231, -inf
        %v261 = vmax.f32 %v253, %v260
        %v262 = vsel %vm239, %v232, -inf
        %v263 = vmax.f32 %v255, %v262
        %v264 = vsel %vm239, %v233, -inf
        %v265 = vmax.f32 %v257, %v264
        %v266 = vsel %vm239, %v234, -inf
        %v267 = vmax.f32 %v259, %v266
        %v268 = vmax.f32 %v261, %v263
        %v269 = vmax.f32 %v265, %v267
        %v270 = vmax.f32 %v268, %v269
        %v271 = vsub.f32 %v219, %v270
        %v272 = vsub.f32 %v220, %v270
        %v273 = vsub.f32 %v221, %v270
        %v274 = vsub.f32 %v222, %v270
        %v275 = vsub.f32 %v223, %v270
        %v276 = vsub.f32 %v224, %v270
        %v277 = vsub.f32 %v225, %v270
        %v278 = vsub.f32 %v226, %v270
        %v279 = vsub.f32 %v227, %v270
        %v280 = vsub.f32 %v228, %v270
        %v281 = vsub.f32 %v229, %v270
        %v282 = vsub.f32 %v230, %v270
        %v283 = vsub.f32 %v231, %v270
        %v284 = vsub.f32 %v232, %v270
        %v285 = vsub.f32 %v233, %v270
        %v286 = vsub.f32 %v234, %v270
        %v287 = vmul.f32 %v271, 1.442695
        %v288 = vpow.pop %v287
        %v289 = vmul.f32 %v272, 1.442695
        %v290 = vpow.pop %v289
        %v291 = vmul.f32 %v273, 1.442695
        %v292 = vpow.pop %v291
        %v293 = vmul.f32 %v274, 1.442695
        %v294 = vpow.pop %v293
        %v295 = vmul.f32 %v275, 1.442695
        %v296 = vpow.pop %v295
        %v297 = vmul.f32 %v276, 1.442695
        %v298 = vpow.pop %v297
        %v299 = vmul.f32 %v277, 1.442695
        %v300 = vpow.pop %v299
        %v301 = vmul.f32 %v278, 1.442695
        %v302 = vpow.pop %v301
        %v303 = vmul.f32 %v279, 1.442695
        %v304 = vpow.pop %v303
        %v305 = vmul.f32 %v280, 1.442695
        %v306 = vpow.pop %v305
        %v307 = vmul.f32 %v281, 1.442695
        %v308 = vpow.pop %v307
        %v309 = vmul.f32 %v282, 1.442695
        %v310 = vpow.pop %v309
        %v311 = vmul.f32 %v283, 1.442695
        %v312 = vpow.pop %v311
        %v313 = vmul.f32 %v284, 1.442695
        %v314 = vpow.pop %v313
        %v315 = vmul.f32 %v285, 1.442695
        %v316 = vpow.pop %v315
        %v317 = vmul.f32 %v286, 1.442695
        %v318 = vpow.pop %v317
        %v319 = vsel %vm239, %v288, 0.0
        %v320 = vsel %vm239, %v290, 0.0
        %v321 = vadd.f32 %v319, %v320
        %v322 = vsel %vm239, %v292, 0.0
        %v323 = vadd.f32 %v321, %v322
        %v324 = vsel %vm239, %v294, 0.0
        %v325 = vadd.f32 %v323, %v324
        %v326 = vsel %vm239, %v296, 0.0
        %v327 = vadd.f32 %v325, %v326
        %v328 = vsel %vm239, %v298, 0.0
        %v329 = vadd.f32 %v327, %v328
        %v330 = vsel %vm239, %v300, 0.0
        %v331 = vadd.f32 %v329, %v330
        %v332 = vsel %vm239, %v302, 0.0
        %v333 = vadd.f32 %v331, %v332
        %v334 = vsel %vm239, %v304, 0.0
        %v335 = vadd.f32 %v333, %v334
        %v336 = vsel %vm239, %v306, 0.0
        %v337 = vadd.f32 %v335, %v336
        %v338 = vsel %vm239, %v308, 0.0
        %v339 = vadd.f32 %v337, %v338
        %v340 = vsel %vm239, %v310, 0.0
        %v341 = vadd.f32 %v339, %v340
        %v342 = vsel %vm239, %v312, 0.0
        %v343 = vadd.f32 %v341, %v342
        %v344 = vsel %vm239, %v314, 0.0
        %v345 = vadd.f32 %v343, %v344
        %v346 = vsel %vm239, %v316, 0.0
        %v347 = vadd.f32 %v345, %v346
        %v348 = vsel %vm239, %v318, 0.0
        %v349 = vadd.f32 %v347, %v348
        %vm350 = vcmp.eq.s32.totalorder %v238, 0
        %vm351 = vcmp.eq.s32.totalorder %v238, 1
        %vm352 = vcmp.eq.s32.totalorder %v238, 2
        %vm353 = vcmp.eq.s32.totalorder %v238, 3
        %vm354 = vcmp.eq.s32.totalorder %v238, 4
        %vm355 = vcmp.eq.s32.totalorder %v238, 5
        %vm356 = vcmp.eq.s32.totalorder %v238, 6
        %vm357 = vcmp.eq.s32.totalorder %v238, 7
        %vm358 = vcmp.eq.s32.totalorder %v238, 8
        %vm359 = vcmp.eq.s32.totalorder %v238, 9
        %vm360 = vcmp.eq.s32.totalorder %v238, 10
        %vm361 = vcmp.eq.s32.totalorder %v238, 11
        %vm362 = vcmp.eq.s32.totalorder %v238, 12
        %vm363 = vcmp.eq.s32.totalorder %v238, 13
        %vm364 = vcmp.eq.s32.totalorder %v238, 14
        %vm365 = vcmp.eq.s32.totalorder %v238, 15
        %v366 = vsel %vm350, %v288, 0.0
        %v367 = vsel %vm351, %v290, 0.0
        %v368 = vsel %vm352, %v292, 0.0
        %v369 = vsel %vm353, %v294, 0.0
        %v370 = vsel %vm354, %v296, 0.0
        %v371 = vsel %vm355, %v298, 0.0
        %v372 = vsel %vm356, %v300, 0.0
        %v373 = vsel %vm357, %v302, 0.0
        %v374 = vsel %vm358, %v304, 0.0
        %v375 = vsel %vm359, %v306, 0.0
        %v376 = vsel %vm360, %v308, 0.0
        %v377 = vsel %vm361, %v310, 0.0
        %v378 = vsel %vm362, %v312, 0.0
        %v379 = vsel %vm363, %v314, 0.0
        %v380 = vsel %vm364, %v316, 0.0
        %v381 = vsel %vm365, %v318, 0.0
        %v382 = vsel %vm239, %v366, 0.0
        %v383 = vsel %vm239, %v367, 0.0
        %v384 = vadd.f32 %v382, %v383
        %v385 = vsel %vm239, %v368, 0.0
        %v386 = vadd.f32 %v384, %v385
        %v387 = vsel %vm239, %v369, 0.0
        %v388 = vadd.f32 %v386, %v387
        %v389 = vsel %vm239, %v370, 0.0
        %v390 = vadd.f32 %v388, %v389
        %v391 = vsel %vm239, %v371, 0.0
        %v392 = vadd.f32 %v390, %v391
        %v393 = vsel %vm239, %v372, 0.0
        %v394 = vadd.f32 %v392, %v393
        %v395 = vsel %vm239, %v373, 0.0
        %v396 = vadd.f32 %v394, %v395
        %v397 = vsel %vm239, %v374, 0.0
        %v398 = vadd.f32 %v396, %v397
        %v399 = vsel %vm239, %v375, 0.0
        %v400 = vadd.f32 %v398, %v399
        %v401 = vsel %vm239, %v376, 0.0
        %v402 = vadd.f32 %v400, %v401
        %v403 = vsel %vm239, %v377, 0.0
        %v404 = vadd.f32 %v402, %v403
        %v405 = vsel %vm239, %v378, 0.0
        %v406 = vadd.f32 %v404, %v405
        %v407 = vsel %vm239, %v379, 0.0
        %v408 = vadd.f32 %v406, %v407
        %v409 = vsel %vm239, %v380, 0.0
        %v410 = vadd.f32 %v408, %v409
        %v411 = vsel %vm239, %v381, 0.0
        %v412 = vadd.f32 %v410, %v411
        %v413 = vlog2.pop %v349
        %v414 = vmul.f32 %v413, 0.6931472
        %v415 = vmax.f32 %v412, 1e-12
        %v416 = vlog2.pop %v415
        %v417 = vmul.f32 %v416, 0.6931472
        %v418 = vsub.f32 %v414, %v417
        %v419 = vsel %vm236, %v418, 0.0
        %v420 = vsel %vm239, %v419, 0.0
        %421 = vadd.xlane.f32.xlu0 %v420
        %v422 = vpop.xlane.xlu0 %421
        %v423 = vrot.slane %v422, 4
        %v424 = vadd.f32 %v422, %v423
        %v425 = vrot.slane %v424, 2
        %v426 = vadd.f32 %v424, %v425
        %v427 = vrot.slane %v426, 1
        %v428 = vadd.f32 %v426, %v427
        %s429 = vtos %v428
        %v430 = vsel %vm236, 1, 0
        %v431 = vcvt.s32.f32 %v430
        %v432 = vsel %vm239, %v431, 0.0
        %433 = vadd.xlane.f32.xlu0 %v432
        %v434 = vpop.xlane.xlu0 %433
        %v435 = vrot.slane %v434, 4
        %v436 = vadd.f32 %v434, %v435
        %v437 = vrot.slane %v436, 2
        %v438 = vadd.f32 %v436, %v437
        %v439 = vrot.slane %v438, 1
        %v440 = vadd.f32 %v438, %v439
        %s441 = vtos %v440
        %v442 = vlaneseq
        %v443 = vshrl.u32 %v442, 7
        %v444 = vlaneseq
        %v445 = vand.u32 %v444, 127
        %vm446 = vcmp.eq.s32.totalorder %v443, 0
        %vm447 = vcmp.eq.s32.totalorder %v445, 0
        %vm448 = vmand %vm446, %vm447
        %v449 = vstv %s429
        %v450 = vsel %vm448, %v449, 0.0
        %vm451 = vcmp.eq.s32.totalorder %v445, 1
        %vm452 = vmand %vm446, %vm451
        %v453 = vstv %s441
        %v454 = vsel %vm452, %v453, %v450
        %455 = vst [vmem:[%s218] sm:$0xff] %v454
        %s456 = sand.u32 %s100, 1
        %s457 = scalar_lea.sflag [#allocation4], %s456
        %s458 = sand.u32 %s100, 1
        %s459 = smul.addr %s458, 8
        %s460 = scalar_lea.vmem [#allocation7], %s459
        // Predicated region
        $region37: #{tpu_custom_call.1} parent=27 // pred_check
          %p461 = pneg %p110
        $region38: #{tpu_custom_call.1} parent=27 // pred_check_branch
          %463 = sbr.rel (%p461) target = $region40
        $region39: #{tpu_custom_call.1} parent=27 // pred_region
          %s465 = ssub.s32 128, 128
          %466 = vsyncadd %s457, %s465
          %s467 = sadd.s32 %s27, %s26
          %s468 = smul.addr %s467, 128
          %s469 = scalar_lea.hbm %s2, %s468
          %s471 = sshll.u32 %s460, 4
          %s472 = int_to_ptr.vmem [resolvable:$true] %s471
          %474 = dma.vmem_to_hbm [thread:$0]  %s472, 128, %s469, %s457
        $region40: #{tpu_custom_call.1} parent=27 // pred_fallthru
          _
      $region28: #{tpu_custom_call.1} parent=5 // pred_fallthru
        _
      %p475 = scmp.le.s32.totalorder 2, %s17
      // Predicated region
      $region41: #{tpu_custom_call.1} parent=5 // pred_check
        %p476 = pneg %p475
      $region42: #{tpu_custom_call.1} parent=5 // pred_check_branch
        %478 = sbr.rel (%p476) target = $region44
      $region43: #{tpu_custom_call.1} parent=5 // pred_region
        %s479 = ssub.s32 %s17, 2
        // Predicated region
        $region45: #{tpu_custom_call.1} parent=43 // pred_check
          %p480 = pneg %p116
        $region46: #{tpu_custom_call.1} parent=43 // pred_check_branch
          %482 = sbr.rel (%p480) target = $region48
        $region47: #{tpu_custom_call.1} parent=43 // pred_region
          %s483 = sand.u32 %s101, 1
          %s484 = scalar_lea.sflag [#allocation4], %s483
          %s485 = sand.u32 %s101, 1
          %s486 = smul.addr %s485, 8
          %s487 = scalar_lea.vmem [#allocation7], %s486
          %488 = dma.done %s484, 128
        $region48: #{tpu_custom_call.1} parent=43 // pred_fallthru
          _
      $region44: #{tpu_custom_call.1} parent=5 // pred_fallthru
        _
    $region6: #{tpu_custom_call.1} parent=1 // loop_footer
      %s21 = sadd.s32 1, %s17
    $region7: #{tpu_custom_call.1} parent=1 // loop_footer_branch
      %16 = sbr.rel target = $region3
    $region8: #{tpu_custom_call.1} parent=1 // loop_exit
      _
    %489 = vsyncpa [#allocation3], 1
    %s490 = scalar_lea.sflag [#allocation3], 1
    %491 = vsyncpa %s490, 1
    %492 = vsyncpa [#allocation6], 1
    %s493 = scalar_lea.sflag [#allocation6], 1
    %494 = vsyncpa %s493, 1
    %495 = vsyncpa [#allocation4], 1
    %s496 = scalar_lea.sflag [#allocation4], 1
    %497 = vsyncpa %s496, 1

</llo_original>
